<compile_context>
chip_gen: v5e
topology: v5e:2x2
jax: 0.10.0
libtpu: 0.0.40
codegen_flags: <defaults>
</compile_context>

<pallas_src>
import jax
import jax.numpy as jnp
from jax.experimental import pallas as pl
from jax.experimental.pallas import tpu as pltpu


def _round_up(x, m):
    return (x + m - 1) // m * m


# ----------------------------------------------------------------------------- kernel


def _make_decoder_kernel(n_layers):
    """Fused n_layers-deep MLP on one batch tile.

    MXU inputs bf16, accumulation f32 (preferred_element_type), bias add +
    ReLU in f32, single bf16 temporary between layers.
    """

    def kernel(*refs):
        z_ref = refs[0]
        out_ref = refs[-1]
        h = z_ref[...]  # bf16 (tile_b, hid)
        for li in range(n_layers):
            w_ref = refs[1 + 2 * li]
            b_ref = refs[2 + 2 * li]
            acc = jnp.dot(h, w_ref[...], preferred_element_type=jnp.float32)
            acc = acc + b_ref[...]
            if li < n_layers - 1:
                h = jnp.maximum(acc, 0.0).astype(jnp.bfloat16)
            else:
                out_ref[...] = acc.astype(out_ref.dtype)

    return kernel


# ----------------------------------------------------------------------------- params


def init_adecoder_params(key, input_dim, inter_dims=(500, 500, 2000), hid_dim=10):
    """PyTorch-style init U(-1/sqrt(fan_in), 1/sqrt(fan_in)).

    Weights stored transposed vs nn.Linear, i.e. (in, out), so the kernel
    computes x @ W + b (== x @ W_torch.T + b).
    """
    dims = [hid_dim, inter_dims[-1]]
    for i in range(len(inter_dims) - 1):
        dims.append(inter_dims[-i - 2])
    dims.append(input_dim)  # e.g. [10, 2000, 500, 500, input_dim]

    params = []
    for li in range(len(dims) - 1):
        fan_in, fan_out = dims[li], dims[li + 1]
        key, kw, kb = jax.random.split(key, 3)
        bound = 1.0 / (fan_in ** 0.5)
        w = jax.random.uniform(kw, (fan_in, fan_out), jnp.float32, -bound, bound)
        b = jax.random.uniform(kb, (1, fan_out), jnp.float32, -bound, bound)
        params.append((w, b))
    return params


def prepare_adecoder_params(params, hid_dim):
    """One-time pad + cast of the weights for the kernel.

    Output feature dims are zero-padded to multiples of 128 (lane-dense, full
    MXU tiles; zero padding is exact through bias-add + ReLU).  Layer-0's K
    dim (hid_dim) is left unpadded — the full-dim block is legal and Mosaic
    pads K internally.  Weights are bf16, biases stay f32.

    Call ONCE and reuse across forward calls (this is the single largest win:
    the padded bf16 weights are read straight from HBM by the kernel instead
    of being re-materialized every call).
    """
    dims = [hid_dim] + [w.shape[1] for w, _ in params]
    pdims = [dims[0]] + [_round_up(d, 128) for d in dims[1:]]

    padded_params = []
    for li, (w, b) in enumerate(params):
        kin, kout = pdims[li], pdims[li + 1]
        w_p = jnp.zeros((kin, kout), jnp.bfloat16)
        w_p = w_p.at[: w.shape[0], : w.shape[1]].set(w.astype(jnp.bfloat16))
        b_p = jnp.zeros((1, kout), jnp.float32)
        b_p = b_p.at[:, : b.shape[1]].set(b)
        padded_params.append((w_p, b_p))

    return padded_params, dims


# ----------------------------------------------------------------------------- config


def _vmem_capacity_bytes():
    try:
        info = pltpu.get_tpu_info()
        cap = getattr(info, "vmem_capacity_bytes", None)
        if cap:
            return int(cap)
    except Exception:
        pass
    return 64 * 1024 * 1024  # conservative: v7x per-TC VMEM


def _pick_tile_and_vmem():
    cap = _vmem_capacity_bytes()
    if cap >= 100 * 1024 * 1024:
        # v5e / v6e: 128 MiB physical VMEM -> big batch tiles, generous limit.
        return 512, 88 * 1024 * 1024
    # v7x: 64 MiB per TensorCore -> smaller tiles, leave compiler headroom.
    return 256, 40 * 1024 * 1024


# ----------------------------------------------------------------------------- forward


def adecoder_forward(z, prepared, *, tile_b=None, out_dtype=jnp.bfloat16,
                     interpret=False):
    """Run the fused decoder MLP as a single batch-tiled Pallas TPU kernel.

    `prepared` is the result of prepare_adecoder_params (padded bf16 weights).
    """
    padded_params, dims = prepared
    B, hid = z.shape
    assert hid == dims[0], (hid, dims[0])
    input_dim = dims[-1]
    n_layers = len(padded_params)

    default_tile_b, vmem_limit = _pick_tile_and_vmem()
    if tile_b is None:
        tile_b = default_tile_b

    # --- batch tiling: multiple of 8, never larger than the (rounded) batch;
    #     split across >= 2 grid steps when possible so v7x megacore engages.
    b_round = _round_up(B, 8)
    tile_b = max(8, _round_up(min(tile_b, b_round), 8))
    if b_round >= 16 and tile_b >= b_round:
        tile_b = _round_up((b_round + 1) // 2, 8)
    b_pad = _round_up(B, tile_b)
    grid = (b_pad // tile_b,)

    # --- activation: bf16 cast + batch padding only (no feature padding).
    z_bf = z.astype(jnp.bfloat16)
    if b_pad != B:
        z_bf = jnp.pad(z_bf, ((0, b_pad - B), (0, 0)))

    flat_inputs = [z_bf]
    in_specs = [pl.BlockSpec((tile_b, hid), lambda i: (i, 0))]
    for (w_p, b_p) in padded_params:
        flat_inputs += [w_p, b_p]
        # Constant index maps: weights/biases are DMA'd once and stay resident
        # in VMEM while Pallas double-buffers the activation tiles.
        in_specs += [
            pl.BlockSpec(w_p.shape, lambda i: (0, 0)),
            pl.BlockSpec(b_p.shape, lambda i: (0, 0)),
        ]

    out_pad = padded_params[-1][0].shape[1]
    out_specs = pl.BlockSpec((tile_b, out_pad), lambda i: (i, 0))

    # Advisory cost estimate with UNPADDED dims / actual batch.
    flops = sum(2 * B * dims[i] * dims[i + 1] for i in range(n_layers))
    bytes_accessed = B * hid * 2                                     # z (bf16)
    bytes_accessed += sum(dims[i] * dims[i + 1] * 2 for i in range(n_layers))
    bytes_accessed += sum(dims[i + 1] * 4 for i in range(n_layers))  # biases
    bytes_accessed += B * input_dim * jnp.dtype(out_dtype).itemsize
    cost = pl.CostEstimate(flops=flops, transcendentals=0,
                           bytes_accessed=bytes_accessed)

    out = pl.pallas_call(
        _make_decoder_kernel(n_layers),
        out_shape=jax.ShapeDtypeStruct((b_pad, out_pad), out_dtype),
        grid=grid,
        in_specs=in_specs,
        out_specs=out_specs,
        compiler_params=pltpu.CompilerParams(
            dimension_semantics=("parallel",),
            vmem_limit_bytes=vmem_limit,
        ),
        cost_estimate=cost,
        interpret=interpret,
    )(*flat_inputs)

    return out[:B, :input_dim]


# ----------------------------------------------------------------------------- reference


def adecoder_reference(z, params, quantize_bf16=True):
    """Pure-JAX reference (optionally with the kernel's bf16 MXU quantization)."""
    h = z
    n = len(params)
    for i, (w, b) in enumerate(params):
        if quantize_bf16:
            h_in = h.astype(jnp.bfloat16).astype(jnp.float32)
            w_in = w.astype(jnp.bfloat16).astype(jnp.float32)
        else:
            h_in, w_in = h, w
        h = jnp.dot(h_in, w_in, preferred_element_type=jnp.float32) + b
        if i < n - 1:
            h = jnp.maximum(h, 0.0)
    return h


# ----------------------------------------------------------------------------- main


if __name__ == "__main__":
    # Small shapes consistent with the module's constructor.
    batch = 8
    hid_dim = 10
    inter_dims = (64, 64, 128)   # scaled-down stand-in for [500, 500, 2000]
    input_dim = 32

    key = jax.random.PRNGKey(0)
    key, kz = jax.random.split(key)
    z = jax.random.normal(kz, (batch, hid_dim), dtype=jnp.float32)

    params = init_adecoder_params(key, input_dim, inter_dims, hid_dim)
    prepared = prepare_adecoder_params(params, hid_dim)   # one-time pad/cast

    out = adecoder_forward(z, prepared)
    out = jax.block_until_ready(out)

    ref = adecoder_reference(z, params, quantize_bf16=True)
    assert out.shape == (batch, input_dim), out.shape

    out_f32 = out.astype(jnp.float32)
    max_err = float(jnp.max(jnp.abs(out_f32 - ref)))
    assert jnp.allclose(out_f32, ref, atol=5e-2, rtol=5e-2), \
        f"mismatch, max_err={max_err}"

    print("KERNEL_OK")
</pallas_src>

<mosaic_0001>
module attributes {stable_mosaic.version = 11 : i64} {
  func.func @kernel(%arg0: i32, %arg1: memref<8x10xbf16, #tpu.memory_space<vmem>>, %arg2: memref<10x128xbf16, #tpu.memory_space<vmem>>, %arg3: memref<1x128xf32, #tpu.memory_space<vmem>>, %arg4: memref<128x128xbf16, #tpu.memory_space<vmem>>, %arg5: memref<1x128xf32, #tpu.memory_space<vmem>>, %arg6: memref<128x128xbf16, #tpu.memory_space<vmem>>, %arg7: memref<1x128xf32, #tpu.memory_space<vmem>>, %arg8: memref<128x128xbf16, #tpu.memory_space<vmem>>, %arg9: memref<1x128xf32, #tpu.memory_space<vmem>>, %arg10: memref<8x128xbf16, #tpu.memory_space<vmem>>) attributes {dimension_semantics = [#tpu.dimension_semantics<parallel>], iteration_bounds = array<i64: 1>, scalar_prefetch = 0 : i64, scratch_operands = 0 : i64, tpu.core_type = #tpu.core_type<tc>, window_params = [{transform_indices = @transform_0, window_bounds = array<i64: 8, 10>}, {pipeline_mode = #tpu.pipeline_mode<synchronous>, transform_indices = @transform_1, window_bounds = array<i64: 10, 128>}, {pipeline_mode = #tpu.pipeline_mode<synchronous>, transform_indices = @transform_2, window_bounds = array<i64: 1, 128>}, {pipeline_mode = #tpu.pipeline_mode<synchronous>, transform_indices = @transform_3, window_bounds = array<i64: 128, 128>}, {pipeline_mode = #tpu.pipeline_mode<synchronous>, transform_indices = @transform_4, window_bounds = array<i64: 1, 128>}, {pipeline_mode = #tpu.pipeline_mode<synchronous>, transform_indices = @transform_5, window_bounds = array<i64: 128, 128>}, {pipeline_mode = #tpu.pipeline_mode<synchronous>, transform_indices = @transform_6, window_bounds = array<i64: 1, 128>}, {pipeline_mode = #tpu.pipeline_mode<synchronous>, transform_indices = @transform_7, window_bounds = array<i64: 128, 128>}, {pipeline_mode = #tpu.pipeline_mode<synchronous>, transform_indices = @transform_8, window_bounds = array<i64: 1, 128>}, {transform_indices = @transform_9, window_bounds = array<i64: 8, 128>}]} {
    %c0 = arith.constant 0 : index
    %c0_0 = arith.constant 0 : index
    %0 = vector.load %arg1[%c0, %c0_0] : memref<8x10xbf16, #tpu.memory_space<vmem>>, vector<8x10xbf16>
    %c0_1 = arith.constant 0 : index
    %c0_2 = arith.constant 0 : index
    %1 = vector.load %arg2[%c0_1, %c0_2] : memref<10x128xbf16, #tpu.memory_space<vmem>>, vector<10x128xbf16>
    %cst = arith.constant dense<0.000000e+00> : vector<8x128xf32>
    %2 = tpu.matmul %0, %1, %cst {dimension_numbers = #tpu.dot_dimension_numbers<[1], [0], [0], [1], [0, 0, 1, 1], [], []>} : vector<8x10xbf16>, vector<10x128xbf16>, vector<8x128xf32> -> vector<8x128xf32>
    %c0_3 = arith.constant 0 : index
    %c0_4 = arith.constant 0 : index
    %3 = vector.load %arg3[%c0_3, %c0_4] : memref<1x128xf32, #tpu.memory_space<vmem>>, vector<1x128xf32>
    %4 = vector.broadcast %3 : vector<1x128xf32> to vector<8x128xf32>
    %5 = arith.addf %2, %4 : vector<8x128xf32>
    %cst_5 = arith.constant 0.000000e+00 : f32
    %6 = vector.broadcast %cst_5 : f32 to vector<8x128xf32>
    %7 = arith.maximumf %5, %6 : vector<8x128xf32>
    %8 = arith.truncf %7 : vector<8x128xf32> to vector<8x128xbf16>
    %c0_6 = arith.constant 0 : index
    %c0_7 = arith.constant 0 : index
    %9 = vector.load %arg4[%c0_6, %c0_7] : memref<128x128xbf16, #tpu.memory_space<vmem>>, vector<128x128xbf16>
    %cst_8 = arith.constant dense<0.000000e+00> : vector<8x128xf32>
    %10 = tpu.matmul %8, %9, %cst_8 {dimension_numbers = #tpu.dot_dimension_numbers<[1], [0], [0], [1], [0, 0, 1, 1], [], []>} : vector<8x128xbf16>, vector<128x128xbf16>, vector<8x128xf32> -> vector<8x128xf32>
    %c0_9 = arith.constant 0 : index
    %c0_10 = arith.constant 0 : index
    %11 = vector.load %arg5[%c0_9, %c0_10] : memref<1x128xf32, #tpu.memory_space<vmem>>, vector<1x128xf32>
    %12 = vector.broadcast %11 : vector<1x128xf32> to vector<8x128xf32>
    %13 = arith.addf %10, %12 : vector<8x128xf32>
    %cst_11 = arith.constant 0.000000e+00 : f32
    %14 = vector.broadcast %cst_11 : f32 to vector<8x128xf32>
    %15 = arith.maximumf %13, %14 : vector<8x128xf32>
    %16 = arith.truncf %15 : vector<8x128xf32> to vector<8x128xbf16>
    %c0_12 = arith.constant 0 : index
    %c0_13 = arith.constant 0 : index
    %17 = vector.load %arg6[%c0_12, %c0_13] : memref<128x128xbf16, #tpu.memory_space<vmem>>, vector<128x128xbf16>
    %cst_14 = arith.constant dense<0.000000e+00> : vector<8x128xf32>
    %18 = tpu.matmul %16, %17, %cst_14 {dimension_numbers = #tpu.dot_dimension_numbers<[1], [0], [0], [1], [0, 0, 1, 1], [], []>} : vector<8x128xbf16>, vector<128x128xbf16>, vector<8x128xf32> -> vector<8x128xf32>
    %c0_15 = arith.constant 0 : index
    %c0_16 = arith.constant 0 : index
    %19 = vector.load %arg7[%c0_15, %c0_16] : memref<1x128xf32, #tpu.memory_space<vmem>>, vector<1x128xf32>
    %20 = vector.broadcast %19 : vector<1x128xf32> to vector<8x128xf32>
    %21 = arith.addf %18, %20 : vector<8x128xf32>
    %cst_17 = arith.constant 0.000000e+00 : f32
    %22 = vector.broadcast %cst_17 : f32 to vector<8x128xf32>
    %23 = arith.maximumf %21, %22 : vector<8x128xf32>
    %24 = arith.truncf %23 : vector<8x128xf32> to vector<8x128xbf16>
    %c0_18 = arith.constant 0 : index
    %c0_19 = arith.constant 0 : index
    %25 = vector.load %arg8[%c0_18, %c0_19] : memref<128x128xbf16, #tpu.memory_space<vmem>>, vector<128x128xbf16>
    %cst_20 = arith.constant dense<0.000000e+00> : vector<8x128xf32>
    %26 = tpu.matmul %24, %25, %cst_20 {dimension_numbers = #tpu.dot_dimension_numbers<[1], [0], [0], [1], [0, 0, 1, 1], [], []>} : vector<8x128xbf16>, vector<128x128xbf16>, vector<8x128xf32> -> vector<8x128xf32>
    %c0_21 = arith.constant 0 : index
    %c0_22 = arith.constant 0 : index
    %27 = vector.load %arg9[%c0_21, %c0_22] : memref<1x128xf32, #tpu.memory_space<vmem>>, vector<1x128xf32>
    %28 = vector.broadcast %27 : vector<1x128xf32> to vector<8x128xf32>
    %29 = arith.addf %26, %28 : vector<8x128xf32>
    %30 = arith.truncf %29 : vector<8x128xf32> to vector<8x128xbf16>
    %c0_23 = arith.constant 0 : index
    %c0_24 = arith.constant 0 : index
    %31 = vector.load %arg10[%c0_23, %c0_24] : memref<8x128xbf16, #tpu.memory_space<vmem>>, vector<8x128xbf16>
    tpu.vector_store %arg10[%c0_23, %c0_24], %30 {strides = array<i32>} : memref<8x128xbf16, #tpu.memory_space<vmem>>, vector<8x128xbf16>,
    return
  }
  func.func @transform_0(%arg0: i32) -> (i32, i32) {
    %c0_i32 = arith.constant 0 : i32
    %c0_i32_0 = arith.constant 0 : i32
    return %arg0, %c0_i32 : i32, i32
  }
  func.func @transform_1(%arg0: i32) -> (i32, i32) {
    %c0_i32 = arith.constant 0 : i32
    %c0_i32_0 = arith.constant 0 : i32
    %c0_i32_1 = arith.constant 0 : i32
    return %c0_i32, %c0_i32_0 : i32, i32
  }
  func.func @transform_2(%arg0: i32) -> (i32, i32) {
    %c0_i32 = arith.constant 0 : i32
    %c0_i32_0 = arith.constant 0 : i32
    %c0_i32_1 = arith.constant 0 : i32
    return %c0_i32, %c0_i32_0 : i32, i32
  }
  func.func @transform_3(%arg0: i32) -> (i32, i32) {
    %c0_i32 = arith.constant 0 : i32
    %c0_i32_0 = arith.constant 0 : i32
    %c0_i32_1 = arith.constant 0 : i32
    return %c0_i32, %c0_i32_0 : i32, i32
  }
  func.func @transform_4(%arg0: i32) -> (i32, i32) {
    %c0_i32 = arith.constant 0 : i32
    %c0_i32_0 = arith.constant 0 : i32
    %c0_i32_1 = arith.constant 0 : i32
    return %c0_i32, %c0_i32_0 : i32, i32
  }
  func.func @transform_5(%arg0: i32) -> (i32, i32) {
    %c0_i32 = arith.constant 0 : i32
    %c0_i32_0 = arith.constant 0 : i32
    %c0_i32_1 = arith.constant 0 : i32
    return %c0_i32, %c0_i32_0 : i32, i32
  }
  func.func @transform_6(%arg0: i32) -> (i32, i32) {
    %c0_i32 = arith.constant 0 : i32
    %c0_i32_0 = arith.constant 0 : i32
    %c0_i32_1 = arith.constant 0 : i32
    return %c0_i32, %c0_i32_0 : i32, i32
  }
  func.func @transform_7(%arg0: i32) -> (i32, i32) {
    %c0_i32 = arith.constant 0 : i32
    %c0_i32_0 = arith.constant 0 : i32
    %c0_i32_1 = arith.constant 0 : i32
    return %c0_i32, %c0_i32_0 : i32, i32
  }
  func.func @transform_8(%arg0: i32) -> (i32, i32) {
    %c0_i32 = arith.constant 0 : i32
    %c0_i32_0 = arith.constant 0 : i32
    %c0_i32_1 = arith.constant 0 : i32
    return %c0_i32, %c0_i32_0 : i32, i32
  }
  func.func @transform_9(%arg0: i32) -> (i32, i32) {
    %c0_i32 = arith.constant 0 : i32
    %c0_i32_0 = arith.constant 0 : i32
    return %arg0, %c0_i32 : i32, i32
  }
}

</mosaic_0001>

<llo_original>
// kernel: tpu_custom_call.1
$region0: #{tpu_custom_call.1}
  #allocation0 [shape = 'u32[]', space=smem, size = 0x4, offset = 0x4, fixed_abs, tag = 'smem constant byte address 0x4 - core index']
  #allocation1 [shape = 'u32[72,128]{1,0:T(1,128)}', space=vmem, size = 0x9000, scoped, tag = 'internal scratch']
  %s0 = inlined_call_operand.hbm [shape: bf16[8,10], index: 0, kind: input, shape index: {}]
  %s1 = inlined_call_operand.hbm [shape: bf16[10,128], index: 1, kind: input, shape index: {}]
  %s2 = inlined_call_operand.vmem [shape: f32[1,128], index: 2, kind: input, shape index: {}]
  %s3 = inlined_call_operand.hbm [shape: bf16[128,128], index: 3, kind: input, shape index: {}]
  %s4 = inlined_call_operand.vmem [shape: f32[1,128], index: 4, kind: input, shape index: {}]
  %s5 = inlined_call_operand.hbm [shape: bf16[128,128], index: 5, kind: input, shape index: {}]
  %s6 = inlined_call_operand.vmem [shape: f32[1,128], index: 6, kind: input, shape index: {}]
  %s7 = inlined_call_operand.hbm [shape: bf16[128,128], index: 7, kind: input, shape index: {}]
  %s8 = inlined_call_operand.vmem [shape: f32[1,128], index: 8, kind: input, shape index: {}]
  %s9 = inlined_call_operand.hbm [shape: bf16[8,128], index: 9, kind: output, shape index: {}]
  %s10 = sld [smem:[#allocation0]]
  $region66: #{tpu_custom_call.1} parent=0
    _
  %s12 = ssub.s32 1, %s10
  %s13 = scalar_select 0, %s12, %s10
  $region1: #{tpu_custom_call.1} parent=0
    #allocation2 [shape = 'u8[2048]{0}', space=vmem, size = 0x800, scoped, tag = 'input window, operand 0, single buffered']
    #allocation3 [shape = 's32[1]{0}', space=sflag, size = 0x4, scoped, tag = 'scoped memory for tpu_custom_call.1']
    #allocation4 [shape = 's32[1]{0}', space=sflag, size = 0x4, scoped, tag = 'scoped memory for tpu_custom_call.1']
    #allocation5 [shape = 'u8[4096]{0}', space=vmem, size = 0x1000, scoped, tag = 'input window, operand 1, single buffered']
    #allocation6 [shape = 's32[1]{0}', space=sflag, size = 0x4, scoped, tag = 'scoped memory for tpu_custom_call.1']
    #allocation7 [shape = 'u8[32768]{0}', space=vmem, size = 0x8000, scoped, tag = 'input window, operand 3, single buffered']
    #allocation8 [shape = 'u8[32768]{0}', space=vmem, size = 0x8000, scoped, tag = 'input window, operand 5, single buffered']
    #allocation9 [shape = 's32[1]{0}', space=sflag, size = 0x4, scoped, tag = 'scoped memory for tpu_custom_call.1']
    #allocation10 [shape = 'u8[32768]{0}', space=vmem, size = 0x8000, scoped, tag = 'input window, operand 7, single buffered']
    #allocation11 [shape = 'u8[2048]{0}', space=vmem, size = 0x800, scoped, tag = 'output window, operand 0, single buffered']
    %14 = vsyncpa [#allocation3], 0
    %15 = vsyncpa [#allocation6], 0
    %16 = vsyncpa [#allocation9], 0
    %17 = vsyncpa [#allocation4], 0
    // Predicated region
    $region2: #{tpu_custom_call.1} parent=1 // pred_check
      _
    $region3: #{tpu_custom_call.1} parent=1 // pred_check_branch
      %19 = sbr.rel (0) target = $region5
    $region4: #{tpu_custom_call.1} parent=1 // pred_region
      %21 = vsyncadd [#allocation3], 0
      %s23 = sshll.u32 %s0, 4
      %s24 = int_to_ptr.hbm [resolvable:$true] %s23
      %s25 = sshll.u32 [#allocation2], 4
      %s26 = int_to_ptr.vmem [resolvable:$true] %s25
      %28 = dma.hbm_to_vmem [thread:$0]  %s24, 64, %s26, [#allocation3]
    $region5: #{tpu_custom_call.1} parent=1 // pred_fallthru
      _
    // Predicated region
    $region6: #{tpu_custom_call.1} parent=1 // pred_check
      _
    $region7: #{tpu_custom_call.1} parent=1 // pred_check_branch
      %30 = sbr.rel (0) target = $region9
    $region8: #{tpu_custom_call.1} parent=1 // pred_region
      %32 = vsyncadd [#allocation6], 0
      %s33 = sshll.u32 %s1, 4
      %s34 = int_to_ptr.hbm [resolvable:$true] %s33
      %s35 = sshll.u32 [#allocation5], 4
      %s36 = int_to_ptr.vmem [resolvable:$true] %s35
      %41 = dma.hbm_to_vmem [thread:$0]  %s34, 128, %s36, [#allocation6], 64, 64, 4
    $region9: #{tpu_custom_call.1} parent=1 // pred_fallthru
      _
    // Predicated region
    $region10: #{tpu_custom_call.1} parent=1 // pred_check
      _
    $region11: #{tpu_custom_call.1} parent=1 // pred_check_branch
      %43 = sbr.rel (0) target = $region13
    $region12: #{tpu_custom_call.1} parent=1 // pred_region
      _
    $region13: #{tpu_custom_call.1} parent=1 // pred_fallthru
      _
    // Predicated region
    $region14: #{tpu_custom_call.1} parent=1 // pred_check
      _
    $region15: #{tpu_custom_call.1} parent=1 // pred_check_branch
      %45 = sbr.rel (0) target = $region17
    $region16: #{tpu_custom_call.1} parent=1 // pred_region
      %47 = vsyncadd [#allocation6], 0
      %s48 = sshll.u32 %s3, 4
      %s49 = int_to_ptr.hbm [resolvable:$true] %s48
      %s50 = sshll.u32 [#allocation7], 4
      %s51 = int_to_ptr.vmem [resolvable:$true] %s50
      %56 = dma.hbm_to_vmem [thread:$0]  %s49, 1024, %s51, [#allocation6], 64, 64, 4
    $region17: #{tpu_custom_call.1} parent=1 // pred_fallthru
      _
    // Predicated region
    $region18: #{tpu_custom_call.1} parent=1 // pred_check
      _
    $region19: #{tpu_custom_call.1} parent=1 // pred_check_branch
      %58 = sbr.rel (0) target = $region21
    $region20: #{tpu_custom_call.1} parent=1 // pred_region
      _
    $region21: #{tpu_custom_call.1} parent=1 // pred_fallthru
      _
    // Predicated region
    $region22: #{tpu_custom_call.1} parent=1 // pred_check
      _
    $region23: #{tpu_custom_call.1} parent=1 // pred_check_branch
      %60 = sbr.rel (0) target = $region25
    $region24: #{tpu_custom_call.1} parent=1 // pred_region
      %62 = vsyncadd [#allocation9], 0
      %s63 = sshll.u32 %s5, 4
      %s64 = int_to_ptr.hbm [resolvable:$true] %s63
      %s65 = sshll.u32 [#allocation8], 4
      %s66 = int_to_ptr.vmem [resolvable:$true] %s65
      %71 = dma.hbm_to_vmem [thread:$0]  %s64, 1024, %s66, [#allocation9], 64, 64, 4
    $region25: #{tpu_custom_call.1} parent=1 // pred_fallthru
      _
    // Predicated region
    $region26: #{tpu_custom_call.1} parent=1 // pred_check
      _
    $region27: #{tpu_custom_call.1} parent=1 // pred_check_branch
      %73 = sbr.rel (0) target = $region29
    $region28: #{tpu_custom_call.1} parent=1 // pred_region
      _
    $region29: #{tpu_custom_call.1} parent=1 // pred_fallthru
      _
    // Predicated region
    $region30: #{tpu_custom_call.1} parent=1 // pred_check
      _
    $region31: #{tpu_custom_call.1} parent=1 // pred_check_branch
      %75 = sbr.rel (0) target = $region33
    $region32: #{tpu_custom_call.1} parent=1 // pred_region
      %77 = vsyncadd [#allocation9], 0
      %s78 = sshll.u32 %s7, 4
      %s79 = int_to_ptr.hbm [resolvable:$true] %s78
      %s80 = sshll.u32 [#allocation10], 4
      %s81 = int_to_ptr.vmem [resolvable:$true] %s80
      %86 = dma.hbm_to_vmem [thread:$0]  %s79, 1024, %s81, [#allocation9], 64, 64, 4
    $region33: #{tpu_custom_call.1} parent=1 // pred_fallthru
      _
    // Predicated region
    $region34: #{tpu_custom_call.1} parent=1 // pred_check
      _
    $region35: #{tpu_custom_call.1} parent=1 // pred_check_branch
      %88 = sbr.rel (0) target = $region37
    $region36: #{tpu_custom_call.1} parent=1 // pred_region
      _
    $region37: #{tpu_custom_call.1} parent=1 // pred_fallthru
      _
    // Predicated region
    $region38: #{tpu_custom_call.1} parent=1 // pred_check
      _
    $region39: #{tpu_custom_call.1} parent=1 // pred_check_branch
      %90 = sbr.rel (0) target = $region41
    $region40: #{tpu_custom_call.1} parent=1 // pred_region
      %92 = dma.done [#allocation3], 64
    $region41: #{tpu_custom_call.1} parent=1 // pred_fallthru
      _
    // Predicated region
    $region42: #{tpu_custom_call.1} parent=1 // pred_check
      _
    $region43: #{tpu_custom_call.1} parent=1 // pred_check_branch
      %94 = sbr.rel (0) target = $region45
    $region44: #{tpu_custom_call.1} parent=1 // pred_region
      %96 = dma.done [#allocation6], 128
    $region45: #{tpu_custom_call.1} parent=1 // pred_fallthru
      _
    // Predicated region
    $region46: #{tpu_custom_call.1} parent=1 // pred_check
      _
    $region47: #{tpu_custom_call.1} parent=1 // pred_check_branch
      %98 = sbr.rel (0) target = $region49
    $region48: #{tpu_custom_call.1} parent=1 // pred_region
      %100 = dma.done [#allocation6], 1024
    $region49: #{tpu_custom_call.1} parent=1 // pred_fallthru
      _
    // Predicated region
    $region50: #{tpu_custom_call.1} parent=1 // pred_check
      _
    $region51: #{tpu_custom_call.1} parent=1 // pred_check_branch
      %102 = sbr.rel (0) target = $region53
    $region52: #{tpu_custom_call.1} parent=1 // pred_region
      %104 = dma.done [#allocation9], 1024
    $region53: #{tpu_custom_call.1} parent=1 // pred_fallthru
      _
    // Predicated region
    $region54: #{tpu_custom_call.1} parent=1 // pred_check
      _
    $region55: #{tpu_custom_call.1} parent=1 // pred_check_branch
      %106 = sbr.rel (0) target = $region57
    $region56: #{tpu_custom_call.1} parent=1 // pred_region
      %108 = dma.done [#allocation9], 1024
    $region57: #{tpu_custom_call.1} parent=1 // pred_fallthru
      _
    %v110 = vld [vmem:[#allocation2] sm:$0xf]
    %v111 = vld [vmem:[#allocation5] sm:$0xf]
    %v112 = vld [vmem:[#allocation5 + $0x4] sm:$0x1]
    %v113 = vld [vmem:[%s2] sm:$0x1]
    %v115 = vperm.slane %v113, 0
    %v119 = vunpack.c.l.b16 %v111
    %v120 = vunpack.c.l.b16 %v112
    %v121 = vpack.c.b16 %v120, %v119
    %vm122 = vcmask 80896
    %v124 = vsel %vm122, %v110, 0
    %vm126 = vcmask 1044480
    %v128 = vsel %vm126, %v121, 0
    %130 = vmatpush.bf16.msra.mxu0 0
    %131 = vmatpush.bf16.msra.mxu0 0
    %132 = vmatpush.bf16.msra.mxu0 0
    %133 = vmatpush.bf16.msra.mxu0 0
    %134 = vmatpush.bf16.msra.mxu0 0
    %135 = vmatpush.bf16.msra.mxu0 0
    %136 = vmatpush.bf16.msra.mxu0 0
    %137 = vmatpush.bf16.msra.mxu0 %v128
    %138 = vmatmul.bf16.gmra.mxu0 %v124
    %v139 = vpop.f32.mrf.mxu0
    %v140 = vadd.f32 %v115, %v139
    %v141 = vpop.f32.mrf.mxu0
    %142 = vdwg.mxu0
    %v143 = vmax.f32 %v140, 0.0
    %v144 = vpack.c.bf16 %v143, %v143
    %v145 = vld [vmem:[#allocation7] sm:$0xf]
    %v146 = vld [vmem:[#allocation7 + $0x4] sm:$0xf]
    %v147 = vld [vmem:[#allocation7 + $0x8] sm:$0xf]
    %v148 = vld [vmem:[#allocation7 + $0xc] sm:$0xf]
    %v149 = vld [vmem:[#allocation7 + $0x10] sm:$0xf]
    %v150 = vld [vmem:[#allocation7 + $0x14] sm:$0xf]
    %v151 = vld [vmem:[#allocation7 + $0x18] sm:$0xf]
    %v152 = vld [vmem:[#allocation7 + $0x1c] sm:$0xf]
    %v153 = vld [vmem:[#allocation7 + $0x20] sm:$0xf]
    %v154 = vld [vmem:[#allocation7 + $0x24] sm:$0xf]
    %v155 = vld [vmem:[#allocation7 + $0x28] sm:$0xf]
    %v156 = vld [vmem:[#allocation7 + $0x2c] sm:$0xf]
    %v157 = vld [vmem:[#allocation7 + $0x30] sm:$0xf]
    %v158 = vld [vmem:[#allocation7 + $0x34] sm:$0xf]
    %v159 = vld [vmem:[#allocation7 + $0x38] sm:$0xf]
    %v160 = vld [vmem:[#allocation7 + $0x3c] sm:$0xf]
    %v161 = vld [vmem:[%s4] sm:$0x1]
    %v163 = vperm.slane %v161, 0
    %v181 = vunpack.c.l.b16 %v145
    %v182 = vunpack.c.l.b16 %v146
    %v183 = vunpack.c.l.b16 %v147
    %v184 = vunpack.c.l.b16 %v148
    %v185 = vunpack.c.l.b16 %v149
    %v186 = vunpack.c.l.b16 %v150
    %v187 = vunpack.c.l.b16 %v151
    %v188 = vunpack.c.l.b16 %v152
    %v189 = vunpack.c.l.b16 %v153
    %v190 = vunpack.c.l.b16 %v154
    %v191 = vunpack.c.l.b16 %v155
    %v192 = vunpack.c.l.b16 %v156
    %v193 = vunpack.c.l.b16 %v157
    %v194 = vunpack.c.l.b16 %v158
    %v195 = vunpack.c.l.b16 %v159
    %v196 = vunpack.c.l.b16 %v160
    %v197 = vpack.c.b16 %v182, %v181
    %v198 = vpack.c.b16 %v184, %v183
    %v199 = vpack.c.b16 %v186, %v185
    %v200 = vpack.c.b16 %v188, %v187
    %v201 = vpack.c.b16 %v190, %v189
    %v202 = vpack.c.b16 %v192, %v191
    %v203 = vpack.c.b16 %v194, %v193
    %v204 = vpack.c.b16 %v196, %v195
    %213 = vmatpush.bf16.msra.mxu0 %v204
    %214 = vmatpush.bf16.msra.mxu0 %v203
    %215 = vmatpush.bf16.msra.mxu0 %v202
    %216 = vmatpush.bf16.msra.mxu0 %v201
    %217 = vmatpush.bf16.msra.mxu0 %v200
    %218 = vmatpush.bf16.msra.mxu0 %v199
    %219 = vmatpush.bf16.msra.mxu0 %v198
    %220 = vmatpush.bf16.msra.mxu0 %v197
    %221 = vmatmul.bf16.gmra.mxu0 %v144
    %v222 = vpop.f32.mrf.mxu0
    %v223 = vadd.f32 %v163, %v222
    %v224 = vpop.f32.mrf.mxu0
    %225 = vdwg.mxu0
    %v226 = vmax.f32 %v223, 0.0
    %v227 = vpack.c.bf16 %v226, %v226
    %v228 = vld [vmem:[#allocation8] sm:$0xf]
    %v229 = vld [vmem:[#allocation8 + $0x4] sm:$0xf]
    %v230 = vld [vmem:[#allocation8 + $0x8] sm:$0xf]
    %v231 = vld [vmem:[#allocation8 + $0xc] sm:$0xf]
    %v232 = vld [vmem:[#allocation8 + $0x10] sm:$0xf]
    %v233 = vld [vmem:[#allocation8 + $0x14] sm:$0xf]
    %v234 = vld [vmem:[#allocation8 + $0x18] sm:$0xf]
    %v235 = vld [vmem:[#allocation8 + $0x1c] sm:$0xf]
    %v236 = vld [vmem:[#allocation8 + $0x20] sm:$0xf]
    %v237 = vld [vmem:[#allocation8 + $0x24] sm:$0xf]
    %v238 = vld [vmem:[#allocation8 + $0x28] sm:$0xf]
    %v239 = vld [vmem:[#allocation8 + $0x2c] sm:$0xf]
    %v240 = vld [vmem:[#allocation8 + $0x30] sm:$0xf]
    %v241 = vld [vmem:[#allocation8 + $0x34] sm:$0xf]
    %v242 = vld [vmem:[#allocation8 + $0x38] sm:$0xf]
    %v243 = vld [vmem:[#allocation8 + $0x3c] sm:$0xf]
    %v244 = vld [vmem:[%s6] sm:$0x1]
    %v246 = vperm.slane %v244, 0
    %v264 = vunpack.c.l.b16 %v228
    %v265 = vunpack.c.l.b16 %v229
    %v266 = vunpack.c.l.b16 %v230
    %v267 = vunpack.c.l.b16 %v231
    %v268 = vunpack.c.l.b16 %v232
    %v269 = vunpack.c.l.b16 %v233
    %v270 = vunpack.c.l.b16 %v234
    %v271 = vunpack.c.l.b16 %v235
    %v272 = vunpack.c.l.b16 %v236
    %v273 = vunpack.c.l.b16 %v237
    %v274 = vunpack.c.l.b16 %v238
    %v275 = vunpack.c.l.b16 %v239
    %v276 = vunpack.c.l.b16 %v240
    %v277 = vunpack.c.l.b16 %v241
    %v278 = vunpack.c.l.b16 %v242
    %v279 = vunpack.c.l.b16 %v243
    %v280 = vpack.c.b16 %v265, %v264
    %v281 = vpack.c.b16 %v267, %v266
    %v282 = vpack.c.b16 %v269, %v268
    %v283 = vpack.c.b16 %v271, %v270
    %v284 = vpack.c.b16 %v273, %v272
    %v285 = vpack.c.b16 %v275, %v274
    %v286 = vpack.c.b16 %v277, %v276
    %v287 = vpack.c.b16 %v279, %v278
    %296 = vmatpush.bf16.msra.mxu0 %v287
    %297 = vmatpush.bf16.msra.mxu0 %v286
    %298 = vmatpush.bf16.msra.mxu0 %v285
    %299 = vmatpush.bf16.msra.mxu0 %v284
    %300 = vmatpush.bf16.msra.mxu0 %v283
    %301 = vmatpush.bf16.msra.mxu0 %v282
    %302 = vmatpush.bf16.msra.mxu0 %v281
    %303 = vmatpush.bf16.msra.mxu0 %v280
    %304 = vmatmul.bf16.gmra.mxu0 %v227
    %v305 = vpop.f32.mrf.mxu0
    %v306 = vadd.f32 %v246, %v305
    %v307 = vpop.f32.mrf.mxu0
    %308 = vdwg.mxu0
    %v309 = vmax.f32 %v306, 0.0
    %v310 = vpack.c.bf16 %v309, %v309
    %v311 = vld [vmem:[#allocation10] sm:$0xf]
    %v312 = vld [vmem:[#allocation10 + $0x4] sm:$0xf]
    %v313 = vld [vmem:[#allocation10 + $0x8] sm:$0xf]
    %v314 = vld [vmem:[#allocation10 + $0xc] sm:$0xf]
    %v315 = vld [vmem:[#allocation10 + $0x10] sm:$0xf]
    %v316 = vld [vmem:[#allocation10 + $0x14] sm:$0xf]
    %v317 = vld [vmem:[#allocation10 + $0x18] sm:$0xf]
    %v318 = vld [vmem:[#allocation10 + $0x1c] sm:$0xf]
    %v319 = vld [vmem:[#allocation10 + $0x20] sm:$0xf]
    %v320 = vld [vmem:[#allocation10 + $0x24] sm:$0xf]
    %v321 = vld [vmem:[#allocation10 + $0x28] sm:$0xf]
    %v322 = vld [vmem:[#allocation10 + $0x2c] sm:$0xf]
    %v323 = vld [vmem:[#allocation10 + $0x30] sm:$0xf]
    %v324 = vld [vmem:[#allocation10 + $0x34] sm:$0xf]
    %v325 = vld [vmem:[#allocation10 + $0x38] sm:$0xf]
    %v326 = vld [vmem:[#allocation10 + $0x3c] sm:$0xf]
    %v327 = vld [vmem:[%s8] sm:$0x1]
    %v329 = vperm.slane %v327, 0
    %v347 = vunpack.c.l.b16 %v311
    %v348 = vunpack.c.l.b16 %v312
    %v349 = vunpack.c.l.b16 %v313
    %v350 = vunpack.c.l.b16 %v314
    %v351 = vunpack.c.l.b16 %v315
    %v352 = vunpack.c.l.b16 %v316
    %v353 = vunpack.c.l.b16 %v317
    %v354 = vunpack.c.l.b16 %v318
    %v355 = vunpack.c.l.b16 %v319
    %v356 = vunpack.c.l.b16 %v320
    %v357 = vunpack.c.l.b16 %v321
    %v358 = vunpack.c.l.b16 %v322
    %v359 = vunpack.c.l.b16 %v323
    %v360 = vunpack.c.l.b16 %v324
    %v361 = vunpack.c.l.b16 %v325
    %v362 = vunpack.c.l.b16 %v326
    %v363 = vpack.c.b16 %v348, %v347
    %v364 = vpack.c.b16 %v350, %v349
    %v365 = vpack.c.b16 %v352, %v351
    %v366 = vpack.c.b16 %v354, %v353
    %v367 = vpack.c.b16 %v356, %v355
    %v368 = vpack.c.b16 %v358, %v357
    %v369 = vpack.c.b16 %v360, %v359
    %v370 = vpack.c.b16 %v362, %v361
    %379 = vmatpush.bf16.msra.mxu0 %v370
    %380 = vmatpush.bf16.msra.mxu0 %v369
    %381 = vmatpush.bf16.msra.mxu0 %v368
    %382 = vmatpush.bf16.msra.mxu0 %v367
    %383 = vmatpush.bf16.msra.mxu0 %v366
    %384 = vmatpush.bf16.msra.mxu0 %v365
    %385 = vmatpush.bf16.msra.mxu0 %v364
    %386 = vmatpush.bf16.msra.mxu0 %v363
    %387 = vmatmul.bf16.gmra.mxu0 %v310
    %v388 = vpop.f32.mrf.mxu0
    %v389 = vadd.f32 %v329, %v388
    %v390 = vpop.f32.mrf.mxu0
    %391 = vdwg.mxu0
    %v392 = vpack.c.bf16 %v389, %v389
    %393 = vst [vmem:[#allocation11] sm:$0xf] %v392
    // Predicated region
    $region58: #{tpu_custom_call.1} parent=1 // pred_check
      _
    $region59: #{tpu_custom_call.1} parent=1 // pred_check_branch
      %395 = sbr.rel (0) target = $region61
    $region60: #{tpu_custom_call.1} parent=1 // pred_region
      %397 = vsyncadd [#allocation4], 0
      %s399 = sshll.u32 [#allocation11], 4
      %s400 = int_to_ptr.vmem [resolvable:$true] %s399
      %s401 = sshll.u32 %s9, 4
      %s402 = int_to_ptr.hbm [resolvable:$true] %s401
      %404 = dma.vmem_to_hbm [thread:$0]  %s400, 64, %s402, [#allocation4]
    $region61: #{tpu_custom_call.1} parent=1 // pred_fallthru
      _
    // Predicated region
    $region62: #{tpu_custom_call.1} parent=1 // pred_check
      _
    $region63: #{tpu_custom_call.1} parent=1 // pred_check_branch
      %406 = sbr.rel (0) target = $region65
    $region64: #{tpu_custom_call.1} parent=1 // pred_region
      %408 = dma.done [#allocation4], 64
    $region65: #{tpu_custom_call.1} parent=1 // pred_fallthru
      _
    %409 = vsyncpa [#allocation3], 1
    %410 = vsyncpa [#allocation6], 1
    %411 = vsyncpa [#allocation9], 1
    %412 = vsyncpa [#allocation4], 1

</llo_original>
